<compile_context>
chip_gen: v6e
topology: v6e:2x2x1
jax: 0.10.0
libtpu: 0.0.40
codegen_flags: <defaults>
</compile_context>

<pallas_src>
import jax
import jax.numpy as jnp
from jax import lax
from jax.experimental import pallas as pl
from jax.experimental.pallas import tpu as pltpu

# ---------------- static config (mirrors MlpPredictor.__init__ args) ----------------
NB_HIDDEN_LAYERS = 2      # >= 2 required for the offline first-layer fold below
IN_DIM = 16
OUT_DIM = 4
HIDDEN = 32

LANE = 128                # batch padding granularity (vreg lane width)
BATCH_TILE_MAX = 8192     # rows per grid step (multiple of 128); ~2-3 MiB VMEM/step


def _mlp_kernel(x_ref, w01_ref, b01_ref, w_h_ref, b_h_ref, w_out_ref, b_out_ref,
                o_ref):
    # Folded (input_layer + first hidden Linear), then ReLU.
    # x_ref is the native [tile, IN] slab; contract IN-with-IN so the result
    # is [H, tile] with the batch on lanes (no wrapper transpose needed).
    h = lax.dot_general(w01_ref[...], x_ref[...],
                        dimension_numbers=(((1,), (1,)), ((), ())),
                        preferred_element_type=jnp.float32) + b01_ref[...]
    h = jnp.maximum(h, 0.0)

    # Remaining hidden layers: relu(W @ h + b)
    for l in range(NB_HIDDEN_LAYERS - 1):   # static trip count -> fully unrolled
        h = jnp.dot(w_h_ref[l], h, preferred_element_type=jnp.float32) + b_h_ref[l]
        h = jnp.maximum(h, 0.0)

    # finalLayer, no activation:  [OUT, H] @ [H, tile] -> [OUT, tile]
    y = jnp.dot(w_out_ref[...], h, preferred_element_type=jnp.float32) + b_out_ref[...]
    o_ref[...] = y.astype(o_ref.dtype)


def prepare_kernel_params(p):
    """Fold input_layer into the first hidden layer (no activation between them)
    and reshape biases to [features, 1] for the batch-on-lanes layout."""
    assert NB_HIDDEN_LAYERS >= 2, "fold assumes at least one hidden layer after input_layer"
    w_in, b_in = p["w_in"], p["b_in"]          # [H, IN], [H]       (torch layout)
    w_h, b_h = p["w_h"], p["b_h"]              # [NB, H, H], [NB, H]
    w_out, b_out = p["w_out"], p["b_out"]      # [OUT, H], [OUT]

    w01 = w_h[0] @ w_in                        # [H, IN]
    b01 = (w_h[0] @ b_in + b_h[0])[:, None]    # [H, 1]
    w_h_rest = w_h[1:]                         # [NB-1, H, H]
    b_h_rest = b_h[1:, :, None]                # [NB-1, H, 1]
    return w01, b01, w_h_rest, b_h_rest, w_out, b_out[:, None]


def _choose_tiling(batch):
    """Pick (tile, padded_batch). tile is a multiple of 128; on v7x we try to
    guarantee >= 2 grid steps so both TensorCores get work."""
    padded = max(LANE, pl.cdiv(batch, LANE) * LANE)
    tile = min(BATCH_TILE_MAX, padded)
    if padded >= 2 * LANE:
        half = max(LANE, (padded // 2) // LANE * LANE)
        tile = min(tile, half)
    padded = pl.cdiv(padded, tile) * tile
    return tile, padded


@jax.jit
def mlp_predictor_forward(x, params):
    """x: [batch, IN_DIM] float32.  params: torch-layout weights/biases (init_params)."""
    batch = x.shape[0]
    w01, b01, w_h_rest, b_h_rest, w_out, b_out = prepare_kernel_params(params)

    tile, padded = _choose_tiling(batch)
    grid = (padded // tile,)

    # Zero-pad only the batch rows (no transpose, no extra HBM pass for aligned
    # batches); padded columns compute relu(bias)-garbage that is sliced off.
    x_p = jnp.pad(x, ((0, padded - batch), (0, 0)))

    n_rest = NB_HIDDEN_LAYERS - 1
    yT = pl.pallas_call(
        _mlp_kernel,
        out_shape=jax.ShapeDtypeStruct((OUT_DIM, padded), x.dtype),
        grid_spec=pl.GridSpec(
            grid=grid,
            in_specs=[
                # activations: native [batch, IN] layout, tiled over batch rows
                pl.BlockSpec((tile, IN_DIM), lambda i: (i, 0)),
                # parameters (~13 KiB total): same block for every grid step
                pl.BlockSpec((HIDDEN, IN_DIM), lambda i: (0, 0)),
                pl.BlockSpec((HIDDEN, 1), lambda i: (0, 0)),
                pl.BlockSpec((n_rest, HIDDEN, HIDDEN), lambda i: (0, 0, 0)),
                pl.BlockSpec((n_rest, HIDDEN, 1), lambda i: (0, 0, 0)),
                pl.BlockSpec((OUT_DIM, HIDDEN), lambda i: (0, 0)),
                pl.BlockSpec((OUT_DIM, 1), lambda i: (0, 0)),
            ],
            # output is [OUT, padded]: lane-dense (batch on lanes), no masked stores
            out_specs=pl.BlockSpec((OUT_DIM, tile), lambda i: (0, i)),
        ),
        compiler_params=pltpu.CompilerParams(
            dimension_semantics=("parallel",)),   # shards batch tiles across TCs (v7x)
    )(x_p, w01, b01, w_h_rest, b_h_rest, w_out, b_out)

    # Back to the module's [batch, OUT_DIM] layout (drop padded rows); fused by jit.
    return yT[:, :batch].T


def init_params(key):
    """Deterministic synthetic parameters in torch.nn.Linear layout ([out, in], [out])."""
    ks = jax.random.split(key, 6)
    scale = 0.1
    w_in = scale * jax.random.normal(ks[0], (HIDDEN, IN_DIM), jnp.float32)
    b_in = scale * jax.random.normal(ks[1], (HIDDEN,), jnp.float32)
    w_h = scale * jax.random.normal(ks[2], (NB_HIDDEN_LAYERS, HIDDEN, HIDDEN), jnp.float32)
    b_h = scale * jax.random.normal(ks[3], (NB_HIDDEN_LAYERS, HIDDEN), jnp.float32)
    w_out = scale * jax.random.normal(ks[4], (OUT_DIM, HIDDEN), jnp.float32)
    b_out = scale * jax.random.normal(ks[5], (OUT_DIM,), jnp.float32)
    return dict(w_in=w_in, b_in=b_in, w_h=w_h, b_h=b_h, w_out=w_out, b_out=b_out)


def reference_forward(x, p):
    """Pure-JAX reference with UNFOLDED layers, matching the PyTorch Sequential."""
    h = x @ p["w_in"].T + p["b_in"]
    for l in range(NB_HIDDEN_LAYERS):
        h = jnp.maximum(h @ p["w_h"][l].T + p["b_h"][l], 0.0)
    return h @ p["w_out"].T + p["b_out"]


if __name__ == "__main__":
    key = jax.random.PRNGKey(0)
    kx, kx2, kp = jax.random.split(key, 3)
    params = init_params(kp)

    # Small batch (single tile, grid=(1,)).
    batch = 8
    x = jax.random.normal(kx, (batch, IN_DIM), jnp.float32)
    out = jax.block_until_ready(mlp_predictor_forward(x, params))
    ref = reference_forward(x, params)
    assert out.shape == (batch, OUT_DIM)
    assert jnp.allclose(out, ref, atol=1e-4, rtol=1e-4), "mismatch vs. JAX reference (batch=8)"

    # Non-aligned batch exercising padding and a multi-step parallel grid.
    batch2 = 300
    x2 = jax.random.normal(kx2, (batch2, IN_DIM), jnp.float32)
    out2 = jax.block_until_ready(mlp_predictor_forward(x2, params))
    ref2 = reference_forward(x2, params)
    assert out2.shape == (batch2, OUT_DIM)
    assert jnp.allclose(out2, ref2, atol=1e-4, rtol=1e-4), "mismatch vs. JAX reference (batch=300)"

    print("KERNEL_OK")
</pallas_src>

<mosaic_0001>
module attributes {stable_mosaic.version = 11 : i64} {
  func.func @_mlp_kernel(%arg0: i32, %arg1: memref<128x16xf32, #tpu.memory_space<vmem>>, %arg2: memref<32x16xf32, #tpu.memory_space<vmem>>, %arg3: memref<32x1xf32, #tpu.memory_space<vmem>>, %arg4: memref<1x32x32xf32, #tpu.memory_space<vmem>>, %arg5: memref<1x32x1xf32, #tpu.memory_space<vmem>>, %arg6: memref<4x32xf32, #tpu.memory_space<vmem>>, %arg7: memref<4x1xf32, #tpu.memory_space<vmem>>, %arg8: memref<4x128xf32, #tpu.memory_space<vmem>>) attributes {dimension_semantics = [#tpu.dimension_semantics<parallel>], iteration_bounds = array<i64: 1>, scalar_prefetch = 0 : i64, scratch_operands = 0 : i64, tpu.core_type = #tpu.core_type<tc>, window_params = [{transform_indices = @transform_0, window_bounds = array<i64: 128, 16>}, {pipeline_mode = #tpu.pipeline_mode<synchronous>, transform_indices = @transform_1, window_bounds = array<i64: 32, 16>}, {pipeline_mode = #tpu.pipeline_mode<synchronous>, transform_indices = @transform_2, window_bounds = array<i64: 32, 1>}, {pipeline_mode = #tpu.pipeline_mode<synchronous>, transform_indices = @transform_3, window_bounds = array<i64: 1, 32, 32>}, {pipeline_mode = #tpu.pipeline_mode<synchronous>, transform_indices = @transform_4, window_bounds = array<i64: 1, 32, 1>}, {pipeline_mode = #tpu.pipeline_mode<synchronous>, transform_indices = @transform_5, window_bounds = array<i64: 4, 32>}, {pipeline_mode = #tpu.pipeline_mode<synchronous>, transform_indices = @transform_6, window_bounds = array<i64: 4, 1>}, {transform_indices = @transform_7, window_bounds = array<i64: 4, 128>}]} {
    %c0 = arith.constant 0 : index
    %c0_0 = arith.constant 0 : index
    %0 = vector.load %arg2[%c0, %c0_0] : memref<32x16xf32, #tpu.memory_space<vmem>>, vector<32x16xf32>
    %c0_1 = arith.constant 0 : index
    %c0_2 = arith.constant 0 : index
    %1 = vector.load %arg1[%c0_1, %c0_2] : memref<128x16xf32, #tpu.memory_space<vmem>>, vector<128x16xf32>
    %cst = arith.constant dense<0.000000e+00> : vector<32x128xf32>
    %2 = tpu.matmul %0, %1, %cst {dimension_numbers = #tpu.dot_dimension_numbers<[1], [1], [0], [0], [0, 0, 1, 0], [], []>} : vector<32x16xf32>, vector<128x16xf32>, vector<32x128xf32> -> vector<32x128xf32>
    %c0_3 = arith.constant 0 : index
    %c0_4 = arith.constant 0 : index
    %3 = vector.load %arg3[%c0_3, %c0_4] : memref<32x1xf32, #tpu.memory_space<vmem>>, vector<32x1xf32>
    %4 = vector.broadcast %3 : vector<32x1xf32> to vector<32x128xf32>
    %5 = arith.addf %2, %4 : vector<32x128xf32>
    %cst_5 = arith.constant 0.000000e+00 : f32
    %6 = vector.broadcast %cst_5 : f32 to vector<32x128xf32>
    %7 = arith.maximumf %5, %6 : vector<32x128xf32>
    %c0_6 = arith.constant 0 : index
    %c0_7 = arith.constant 0 : index
    %c0_8 = arith.constant 0 : index
    %8 = vector.load %arg4[%c0_6, %c0_7, %c0_8] : memref<1x32x32xf32, #tpu.memory_space<vmem>>, vector<1x32x32xf32>
    %9 = vector.shape_cast %8 : vector<1x32x32xf32> to vector<32x32xf32>
    %cst_9 = arith.constant dense<0.000000e+00> : vector<32x128xf32>
    %10 = tpu.matmul %9, %7, %cst_9 {dimension_numbers = #tpu.dot_dimension_numbers<[1], [0], [0], [1], [0, 0, 1, 1], [], []>} : vector<32x32xf32>, vector<32x128xf32>, vector<32x128xf32> -> vector<32x128xf32>
    %c0_10 = arith.constant 0 : index
    %c0_11 = arith.constant 0 : index
    %c0_12 = arith.constant 0 : index
    %11 = vector.load %arg5[%c0_10, %c0_11, %c0_12] : memref<1x32x1xf32, #tpu.memory_space<vmem>>, vector<1x32x1xf32>
    %12 = vector.shape_cast %11 : vector<1x32x1xf32> to vector<32x1xf32>
    %13 = vector.broadcast %12 : vector<32x1xf32> to vector<32x128xf32>
    %14 = arith.addf %10, %13 : vector<32x128xf32>
    %cst_13 = arith.constant 0.000000e+00 : f32
    %15 = vector.broadcast %cst_13 : f32 to vector<32x128xf32>
    %16 = arith.maximumf %14, %15 : vector<32x128xf32>
    %c0_14 = arith.constant 0 : index
    %c0_15 = arith.constant 0 : index
    %17 = vector.load %arg6[%c0_14, %c0_15] : memref<4x32xf32, #tpu.memory_space<vmem>>, vector<4x32xf32>
    %cst_16 = arith.constant dense<0.000000e+00> : vector<4x128xf32>
    %18 = tpu.matmul %17, %16, %cst_16 {dimension_numbers = #tpu.dot_dimension_numbers<[1], [0], [0], [1], [0, 0, 1, 1], [], []>} : vector<4x32xf32>, vector<32x128xf32>, vector<4x128xf32> -> vector<4x128xf32>
    %c0_17 = arith.constant 0 : index
    %c0_18 = arith.constant 0 : index
    %19 = vector.load %arg7[%c0_17, %c0_18] : memref<4x1xf32, #tpu.memory_space<vmem>>, vector<4x1xf32>
    %20 = vector.broadcast %19 : vector<4x1xf32> to vector<4x128xf32>
    %21 = arith.addf %18, %20 : vector<4x128xf32>
    %c0_19 = arith.constant 0 : index
    %c0_20 = arith.constant 0 : index
    %22 = vector.load %arg8[%c0_19, %c0_20] : memref<4x128xf32, #tpu.memory_space<vmem>>, vector<4x128xf32>
    tpu.vector_store %arg8[%c0_19, %c0_20], %21 {strides = array<i32>} : memref<4x128xf32, #tpu.memory_space<vmem>>, vector<4x128xf32>,
    return
  }
  func.func @transform_0(%arg0: i32) -> (i32, i32) {
    %c0_i32 = arith.constant 0 : i32
    %c0_i32_0 = arith.constant 0 : i32
    return %arg0, %c0_i32 : i32, i32
  }
  func.func @transform_1(%arg0: i32) -> (i32, i32) {
    %c0_i32 = arith.constant 0 : i32
    %c0_i32_0 = arith.constant 0 : i32
    %c0_i32_1 = arith.constant 0 : i32
    return %c0_i32, %c0_i32_0 : i32, i32
  }
  func.func @transform_2(%arg0: i32) -> (i32, i32) {
    %c0_i32 = arith.constant 0 : i32
    %c0_i32_0 = arith.constant 0 : i32
    %c0_i32_1 = arith.constant 0 : i32
    return %c0_i32, %c0_i32_0 : i32, i32
  }
  func.func @transform_3(%arg0: i32) -> (i32, i32, i32) {
    %c0_i32 = arith.constant 0 : i32
    %c0_i32_0 = arith.constant 0 : i32
    %c0_i32_1 = arith.constant 0 : i32
    %c0_i32_2 = arith.constant 0 : i32
    return %c0_i32, %c0_i32_0, %c0_i32_1 : i32, i32, i32
  }
  func.func @transform_4(%arg0: i32) -> (i32, i32, i32) {
    %c0_i32 = arith.constant 0 : i32
    %c0_i32_0 = arith.constant 0 : i32
    %c0_i32_1 = arith.constant 0 : i32
    %c0_i32_2 = arith.constant 0 : i32
    return %c0_i32, %c0_i32_0, %c0_i32_1 : i32, i32, i32
  }
  func.func @transform_5(%arg0: i32) -> (i32, i32) {
    %c0_i32 = arith.constant 0 : i32
    %c0_i32_0 = arith.constant 0 : i32
    %c0_i32_1 = arith.constant 0 : i32
    return %c0_i32, %c0_i32_0 : i32, i32
  }
  func.func @transform_6(%arg0: i32) -> (i32, i32) {
    %c0_i32 = arith.constant 0 : i32
    %c0_i32_0 = arith.constant 0 : i32
    %c0_i32_1 = arith.constant 0 : i32
    return %c0_i32, %c0_i32_0 : i32, i32
  }
  func.func @transform_7(%arg0: i32) -> (i32, i32) {
    %c0_i32 = arith.constant 0 : i32
    %c0_i32_0 = arith.constant 0 : i32
    return %c0_i32, %arg0 : i32, i32
  }
}

</mosaic_0001>

<llo_original>
// kernel: mlp_predictor_forward.1
$region0: #{mlp_predictor_forward.1}
  #allocation0 [shape = 'u32[]', space=smem, size = 0x4, offset = 0x4, fixed_abs, tag = 'smem constant byte address 0x4 - core index']
  #allocation1 [shape = 'u32[144,128]{1,0:T(1,128)}', space=vmem, size = 0x12000, scoped, tag = 'internal scratch']
  %s0 = inlined_call_operand.vmem [shape: f32[128,16], index: 0, kind: input, shape index: {}]
  %s1 = inlined_call_operand.vmem [shape: f32[32,16], index: 1, kind: input, shape index: {}]
  %s2 = inlined_call_operand.vmem [shape: f32[32,1], index: 2, kind: input, shape index: {}]
  %s3 = inlined_call_operand.vmem [shape: f32[1,32,32], index: 3, kind: input, shape index: {}]
  %s4 = inlined_call_operand.vmem [shape: f32[1,32,1], index: 4, kind: input, shape index: {}]
  %s5 = inlined_call_operand.vmem [shape: f32[4,32], index: 5, kind: input, shape index: {}]
  %s6 = inlined_call_operand.vmem [shape: f32[4,1], index: 6, kind: input, shape index: {}]
  %s7 = inlined_call_operand.vmem [shape: f32[4,128], index: 7, kind: output, shape index: {}]
  %s8 = sld [smem:[#allocation0]]
  $region38: #{mlp_predictor_forward.1} parent=0
    _
  %s10 = ssub.s32 1, %s8
  %s11 = scalar_select 0, %s10, %s8
  // Predicated region
  $region2: #{mlp_predictor_forward.1} parent=0 // pred_check
    _
  $region3: #{mlp_predictor_forward.1} parent=0 // pred_check_branch
    %13 = sbr.rel (0) target = $region5
  $region4: #{mlp_predictor_forward.1} parent=0 // pred_region
    _
  $region5: #{mlp_predictor_forward.1} parent=0 // pred_fallthru
    _
  // Predicated region
  $region6: #{mlp_predictor_forward.1} parent=0 // pred_check
    _
  $region7: #{mlp_predictor_forward.1} parent=0 // pred_check_branch
    %15 = sbr.rel (0) target = $region9
  $region8: #{mlp_predictor_forward.1} parent=0 // pred_region
    _
  $region9: #{mlp_predictor_forward.1} parent=0 // pred_fallthru
    _
  // Predicated region
  $region10: #{mlp_predictor_forward.1} parent=0 // pred_check
    _
  $region11: #{mlp_predictor_forward.1} parent=0 // pred_check_branch
    %17 = sbr.rel (0) target = $region13
  $region12: #{mlp_predictor_forward.1} parent=0 // pred_region
    _
  $region13: #{mlp_predictor_forward.1} parent=0 // pred_fallthru
    _
  // Predicated region
  $region14: #{mlp_predictor_forward.1} parent=0 // pred_check
    _
  $region15: #{mlp_predictor_forward.1} parent=0 // pred_check_branch
    %19 = sbr.rel (0) target = $region17
  $region16: #{mlp_predictor_forward.1} parent=0 // pred_region
    _
  $region17: #{mlp_predictor_forward.1} parent=0 // pred_fallthru
    _
  // Predicated region
  $region18: #{mlp_predictor_forward.1} parent=0 // pred_check
    _
  $region19: #{mlp_predictor_forward.1} parent=0 // pred_check_branch
    %21 = sbr.rel (0) target = $region21
  $region20: #{mlp_predictor_forward.1} parent=0 // pred_region
    _
  $region21: #{mlp_predictor_forward.1} parent=0 // pred_fallthru
    _
  // Predicated region
  $region22: #{mlp_predictor_forward.1} parent=0 // pred_check
    _
  $region23: #{mlp_predictor_forward.1} parent=0 // pred_check_branch
    %23 = sbr.rel (0) target = $region25
  $region24: #{mlp_predictor_forward.1} parent=0 // pred_region
    _
  $region25: #{mlp_predictor_forward.1} parent=0 // pred_fallthru
    _
  // Predicated region
  $region26: #{mlp_predictor_forward.1} parent=0 // pred_check
    _
  $region27: #{mlp_predictor_forward.1} parent=0 // pred_check_branch
    %25 = sbr.rel (0) target = $region29
  $region28: #{mlp_predictor_forward.1} parent=0 // pred_region
    _
  $region29: #{mlp_predictor_forward.1} parent=0 // pred_fallthru
    _
  %v26 = vld [vmem:[%s1] sm:$0xff]
  %v27 = vld [vmem:[%s1 + $0x8] sm:$0xff]
  %v28 = vld [vmem:[%s1 + $0x10] sm:$0xff]
  %v29 = vld [vmem:[%s1 + $0x18] sm:$0xff]
  %v30 = vld [vmem:[%s0] sm:$0xff]
  %v31 = vld [vmem:[%s0 + $0x8] sm:$0xff]
  %v32 = vld [vmem:[%s0 + $0x10] sm:$0xff]
  %v33 = vld [vmem:[%s0 + $0x18] sm:$0xff]
  %v34 = vld [vmem:[%s0 + $0x20] sm:$0xff]
  %v35 = vld [vmem:[%s0 + $0x28] sm:$0xff]
  %v36 = vld [vmem:[%s0 + $0x30] sm:$0xff]
  %v37 = vld [vmem:[%s0 + $0x38] sm:$0xff]
  %v38 = vld [vmem:[%s0 + $0x40] sm:$0xff]
  %v39 = vld [vmem:[%s0 + $0x48] sm:$0xff]
  %v40 = vld [vmem:[%s0 + $0x50] sm:$0xff]
  %v41 = vld [vmem:[%s0 + $0x58] sm:$0xff]
  %v42 = vld [vmem:[%s0 + $0x60] sm:$0xff]
  %v43 = vld [vmem:[%s0 + $0x68] sm:$0xff]
  %v44 = vld [vmem:[%s0 + $0x70] sm:$0xff]
  %v45 = vld [vmem:[%s0 + $0x78] sm:$0xff]
  %v46 = vld [vmem:[%s2] sm:$0xff]
  %v47 = vld [vmem:[%s2 + $0x8] sm:$0xff]
  %v48 = vld [vmem:[%s2 + $0x10] sm:$0xff]
  %v49 = vld [vmem:[%s2 + $0x18] sm:$0xff]
  %51 = vset.pattern.permute.xlu0 0
  %52 = vperm.xlu0 %51, %v46
  %v53 = vpop.permute.xlu0 %52
  %56 = vset.pattern.permute.xlu0 0
  %57 = vperm.xlu0 %56, %v47
  %v58 = vpop.permute.xlu0 %57
  %61 = vset.pattern.permute.xlu0 0
  %62 = vperm.xlu0 %61, %v48
  %v63 = vpop.permute.xlu0 %62
  %66 = vset.pattern.permute.xlu0 0
  %67 = vperm.xlu0 %66, %v49
  %v68 = vpop.permute.xlu0 %67
  %vm70 = vcmask 130048
  %v72 = vsel %vm70, %v26, 0
  %v75 = vsel %vm70, %v27, 0
  %v78 = vsel %vm70, %v28, 0
  %v81 = vsel %vm70, %v29, 0
  %v84 = vsel %vm70, %v30, 0
  %v87 = vsel %vm70, %v31, 0
  %v90 = vsel %vm70, %v32, 0
  %v93 = vsel %vm70, %v33, 0
  %v96 = vsel %vm70, %v34, 0
  %v99 = vsel %vm70, %v35, 0
  %v102 = vsel %vm70, %v36, 0
  %v105 = vsel %vm70, %v37, 0
  %v108 = vsel %vm70, %v38, 0
  %v111 = vsel %vm70, %v39, 0
  %v114 = vsel %vm70, %v40, 0
  %v117 = vsel %vm70, %v41, 0
  %v120 = vsel %vm70, %v42, 0
  %v123 = vsel %vm70, %v43, 0
  %v126 = vsel %vm70, %v44, 0
  %v129 = vsel %vm70, %v45, 0
  %131 = vmatprep.subr.mxu0 0.0
  %132 = vmatpush1.xpose.msra.mxu0 %v129
  %133 = vmatprep.subr.mxu0 0.0
  %134 = vmatpush1.xpose.msra.mxu0 %v126
  %135 = vmatprep.subr.mxu0 0.0
  %136 = vmatpush1.xpose.msra.mxu0 %v123
  %137 = vmatprep.subr.mxu0 0.0
  %138 = vmatpush1.xpose.msra.mxu0 %v120
  %139 = vmatprep.subr.mxu0 0.0
  %140 = vmatpush1.xpose.msra.mxu0 %v117
  %141 = vmatprep.subr.mxu0 0.0
  %142 = vmatpush1.xpose.msra.mxu0 %v114
  %143 = vmatprep.subr.mxu0 0.0
  %144 = vmatpush1.xpose.msra.mxu0 %v111
  %145 = vmatprep.subr.mxu0 0.0
  %146 = vmatpush1.xpose.msra.mxu0 %v108
  %147 = vmatprep.subr.mxu0 0.0
  %148 = vmatpush1.xpose.msra.mxu0 %v105
  %149 = vmatprep.subr.mxu0 0.0
  %150 = vmatpush1.xpose.msra.mxu0 %v102
  %151 = vmatprep.subr.mxu0 0.0
  %152 = vmatpush1.xpose.msra.mxu0 %v99
  %153 = vmatprep.subr.mxu0 0.0
  %154 = vmatpush1.xpose.msra.mxu0 %v96
  %155 = vmatprep.subr.mxu0 0.0
  %156 = vmatpush1.xpose.msra.mxu0 %v93
  %157 = vmatprep.subr.mxu0 0.0
  %158 = vmatpush1.xpose.msra.mxu0 %v90
  %159 = vmatprep.subr.mxu0 0.0
  %160 = vmatpush1.xpose.msra.mxu0 %v87
  %161 = vmatprep.subr.mxu0 0.0
  %162 = vmatpush1.xpose.msra.mxu0 %v84
  %163 = vmatprep.subr.mxu0 0.0
  %164 = vmatpush2.xpose.msra.mxu0 0.0
  %165 = vmatprep.subr.mxu0 0.0
  %166 = vmatpush2.xpose.msra.mxu0 0.0
  %167 = vmatprep.subr.mxu0 0.0
  %168 = vmatpush2.xpose.msra.mxu0 0.0
  %169 = vmatprep.subr.mxu0 0.0
  %170 = vmatpush2.xpose.msra.mxu0 0.0
  %171 = vmatprep.subr.mxu0 0.0
  %172 = vmatpush2.xpose.msra.mxu0 0.0
  %173 = vmatprep.subr.mxu0 0.0
  %174 = vmatpush2.xpose.msra.mxu0 0.0
  %175 = vmatprep.subr.mxu0 0.0
  %176 = vmatpush2.xpose.msra.mxu0 0.0
  %177 = vmatprep.subr.mxu0 0.0
  %178 = vmatpush2.xpose.msra.mxu0 0.0
  %179 = vmatprep.subr.mxu0 0.0
  %180 = vmatpush2.xpose.msra.mxu0 0.0
  %181 = vmatprep.subr.mxu0 0.0
  %182 = vmatpush2.xpose.msra.mxu0 0.0
  %183 = vmatprep.subr.mxu0 0.0
  %184 = vmatpush2.xpose.msra.mxu0 0.0
  %185 = vmatprep.subr.mxu0 0.0
  %186 = vmatpush2.xpose.msra.mxu0 0.0
  %187 = vmatprep.subr.mxu0 0.0
  %188 = vmatpush2.xpose.msra.mxu0 0.0
  %189 = vmatprep.subr.mxu0 0.0
  %190 = vmatpush2.xpose.msra.mxu0 0.0
  %191 = vmatprep.subr.mxu0 0.0
  %192 = vmatpush2.xpose.msra.mxu0 0.0
  %193 = vmatprep.subr.mxu0 0.0
  %194 = vmatpush2.xpose.msra.mxu0 0.0
  %195 = vmatprep.mubr.f32.mxu0 0.0
  %196 = vmatmul.mubr.f32.gmra.mxu0 %v72
  %v197 = vpop.f32.mrf.mxu0
  %v198 = vadd.f32 %v53, %v197
  %v199 = vpop.f32.mrf.mxu0
  %200 = vmatprep.mubr.f32.mxu0 0.0
  %201 = vmatmul.mubr.f32.gmra.mxu0 %v75
  %v202 = vpop.f32.mrf.mxu0
  %v203 = vadd.f32 %v58, %v202
  %v204 = vpop.f32.mrf.mxu0
  %205 = vmatprep.mubr.f32.mxu0 0.0
  %206 = vmatmul.mubr.f32.gmra.mxu0 %v78
  %v207 = vpop.f32.mrf.mxu0
  %v208 = vadd.f32 %v63, %v207
  %v209 = vpop.f32.mrf.mxu0
  %210 = vmatprep.mubr.f32.mxu0 0.0
  %211 = vmatmul.mubr.f32.gmra.mxu0 %v81
  %v212 = vpop.f32.mrf.mxu0
  %v213 = vadd.f32 %v68, %v212
  %v214 = vpop.f32.mrf.mxu0
  %215 = vdwg.mxu0
  %v216 = vmax.f32 %v198, 0.0
  %v217 = vmax.f32 %v203, 0.0
  %v218 = vmax.f32 %v208, 0.0
  %v219 = vmax.f32 %v213, 0.0
  %v220 = vld [vmem:[%s3] sm:$0xff]
  %v221 = vld [vmem:[%s3 + $0x8] sm:$0xff]
  %v222 = vld [vmem:[%s3 + $0x10] sm:$0xff]
  %v223 = vld [vmem:[%s3 + $0x18] sm:$0xff]
  %v224 = vld [vmem:[%s4] sm:$0xff]
  %v225 = vld [vmem:[%s4 + $0x8] sm:$0xff]
  %v226 = vld [vmem:[%s4 + $0x10] sm:$0xff]
  %v227 = vld [vmem:[%s4 + $0x18] sm:$0xff]
  %229 = vset.pattern.permute.xlu0 0
  %230 = vperm.xlu0 %229, %v224
  %v231 = vpop.permute.xlu0 %230
  %234 = vset.pattern.permute.xlu0 0
  %235 = vperm.xlu0 %234, %v225
  %v236 = vpop.permute.xlu0 %235
  %239 = vset.pattern.permute.xlu0 0
  %240 = vperm.xlu0 %239, %v226
  %v241 = vpop.permute.xlu0 %240
  %244 = vset.pattern.permute.xlu0 0
  %245 = vperm.xlu0 %244, %v227
  %v246 = vpop.permute.xlu0 %245
  %vm248 = vcmask 261120
  %v250 = vsel %vm248, %v220, 0
  %v253 = vsel %vm248, %v221, 0
  %v256 = vsel %vm248, %v222, 0
  %v259 = vsel %vm248, %v223, 0
  %261 = vmatprep.subr.mxu0 0.0
  %262 = vmatpush1.msra.mxu0 0.0
  %263 = vmatprep.subr.mxu0 0.0
  %264 = vmatpush1.msra.mxu0 0.0
  %265 = vmatprep.subr.mxu0 0.0
  %266 = vmatpush1.msra.mxu0 0.0
  %267 = vmatprep.subr.mxu0 0.0
  %268 = vmatpush1.msra.mxu0 0.0
  %269 = vmatprep.subr.mxu0 0.0
  %270 = vmatpush1.msra.mxu0 0.0
  %271 = vmatprep.subr.mxu0 0.0
  %272 = vmatpush1.msra.mxu0 0.0
  %273 = vmatprep.subr.mxu0 0.0
  %274 = vmatpush1.msra.mxu0 0.0
  %275 = vmatprep.subr.mxu0 0.0
  %276 = vmatpush1.msra.mxu0 0.0
  %277 = vmatprep.subr.mxu0 0.0
  %278 = vmatpush1.msra.mxu0 0.0
  %279 = vmatprep.subr.mxu0 0.0
  %280 = vmatpush1.msra.mxu0 0.0
  %281 = vmatprep.subr.mxu0 0.0
  %282 = vmatpush1.msra.mxu0 0.0
  %283 = vmatprep.subr.mxu0 0.0
  %284 = vmatpush1.msra.mxu0 0.0
  %285 = vmatprep.subr.mxu0 0.0
  %286 = vmatpush1.msra.mxu0 %v219
  %287 = vmatprep.subr.mxu0 0.0
  %288 = vmatpush1.msra.mxu0 %v218
  %289 = vmatprep.subr.mxu0 0.0
  %290 = vmatpush1.msra.mxu0 %v217
  %291 = vmatprep.subr.mxu0 0.0
  %292 = vmatpush1.msra.mxu0 %v216
  %293 = vmatprep.subr.mxu0 0.0
  %294 = vmatpush2.msra.mxu0 0.0
  %295 = vmatprep.subr.mxu0 0.0
  %296 = vmatpush2.msra.mxu0 0.0
  %297 = vmatprep.subr.mxu0 0.0
  %298 = vmatpush2.msra.mxu0 0.0
  %299 = vmatprep.subr.mxu0 0.0
  %300 = vmatpush2.msra.mxu0 0.0
  %301 = vmatprep.subr.mxu0 0.0
  %302 = vmatpush2.msra.mxu0 0.0
  %303 = vmatprep.subr.mxu0 0.0
  %304 = vmatpush2.msra.mxu0 0.0
  %305 = vmatprep.subr.mxu0 0.0
  %306 = vmatpush2.msra.mxu0 0.0
  %307 = vmatprep.subr.mxu0 0.0
  %308 = vmatpush2.msra.mxu0 0.0
  %309 = vmatprep.subr.mxu0 0.0
  %310 = vmatpush2.msra.mxu0 0.0
  %311 = vmatprep.subr.mxu0 0.0
  %312 = vmatpush2.msra.mxu0 0.0
  %313 = vmatprep.subr.mxu0 0.0
  %314 = vmatpush2.msra.mxu0 0.0
  %315 = vmatprep.subr.mxu0 0.0
  %316 = vmatpush2.msra.mxu0 0.0
  %317 = vmatprep.subr.mxu0 0.0
  %318 = vmatpush2.msra.mxu0 0.0
  %319 = vmatprep.subr.mxu0 0.0
  %320 = vmatpush2.msra.mxu0 0.0
  %321 = vmatprep.subr.mxu0 0.0
  %322 = vmatpush2.msra.mxu0 0.0
  %323 = vmatprep.subr.mxu0 0.0
  %324 = vmatpush2.msra.mxu0 0.0
  %325 = vmatprep.mubr.f32.mxu0 0.0
  %326 = vmatmul.mubr.f32.gmra.mxu0 %v250
  %v327 = vpop.f32.mrf.mxu0
  %v328 = vadd.f32 %v231, %v327
  %v329 = vpop.f32.mrf.mxu0
  %330 = vmatprep.mubr.f32.mxu0 0.0
  %331 = vmatmul.mubr.f32.gmra.mxu0 %v253
  %v332 = vpop.f32.mrf.mxu0
  %v333 = vadd.f32 %v236, %v332
  %v334 = vpop.f32.mrf.mxu0
  %335 = vmatprep.mubr.f32.mxu0 0.0
  %336 = vmatmul.mubr.f32.gmra.mxu0 %v256
  %v337 = vpop.f32.mrf.mxu0
  %v338 = vadd.f32 %v241, %v337
  %v339 = vpop.f32.mrf.mxu0
  %340 = vmatprep.mubr.f32.mxu0 0.0
  %341 = vmatmul.mubr.f32.gmra.mxu0 %v259
  %v342 = vpop.f32.mrf.mxu0
  %v343 = vadd.f32 %v246, %v342
  %v344 = vpop.f32.mrf.mxu0
  %345 = vdwg.mxu0
  %v346 = vmax.f32 %v328, 0.0
  %v347 = vmax.f32 %v333, 0.0
  %v348 = vmax.f32 %v338, 0.0
  %v349 = vmax.f32 %v343, 0.0
  %v350 = vld [vmem:[%s5] sm:$0xf]
  %v351 = vld [vmem:[%s6] sm:$0xf]
  %353 = vset.pattern.permute.xlu0 0
  %354 = vperm.xlu0 %353, %v351
  %v355 = vpop.permute.xlu0 %354
  %v358 = vsel %vm248, %v350, 0
  %360 = vmatprep.subr.mxu0 0.0
  %361 = vmatpush1.msra.mxu0 0.0
  %362 = vmatprep.subr.mxu0 0.0
  %363 = vmatpush1.msra.mxu0 0.0
  %364 = vmatprep.subr.mxu0 0.0
  %365 = vmatpush1.msra.mxu0 0.0
  %366 = vmatprep.subr.mxu0 0.0
  %367 = vmatpush1.msra.mxu0 0.0
  %368 = vmatprep.subr.mxu0 0.0
  %369 = vmatpush1.msra.mxu0 0.0
  %370 = vmatprep.subr.mxu0 0.0
  %371 = vmatpush1.msra.mxu0 0.0
  %372 = vmatprep.subr.mxu0 0.0
  %373 = vmatpush1.msra.mxu0 0.0
  %374 = vmatprep.subr.mxu0 0.0
  %375 = vmatpush1.msra.mxu0 0.0
  %376 = vmatprep.subr.mxu0 0.0
  %377 = vmatpush1.msra.mxu0 0.0
  %378 = vmatprep.subr.mxu0 0.0
  %379 = vmatpush1.msra.mxu0 0.0
  %380 = vmatprep.subr.mxu0 0.0
  %381 = vmatpush1.msra.mxu0 0.0
  %382 = vmatprep.subr.mxu0 0.0
  %383 = vmatpush1.msra.mxu0 0.0
  %384 = vmatprep.subr.mxu0 0.0
  %385 = vmatpush1.msra.mxu0 %v349
  %386 = vmatprep.subr.mxu0 0.0
  %387 = vmatpush1.msra.mxu0 %v348
  %388 = vmatprep.subr.mxu0 0.0
  %389 = vmatpush1.msra.mxu0 %v347
  %390 = vmatprep.subr.mxu0 0.0
  %391 = vmatpush1.msra.mxu0 %v346
  %392 = vmatprep.subr.mxu0 0.0
  %393 = vmatpush2.msra.mxu0 0.0
  %394 = vmatprep.subr.mxu0 0.0
  %395 = vmatpush2.msra.mxu0 0.0
  %396 = vmatprep.subr.mxu0 0.0
  %397 = vmatpush2.msra.mxu0 0.0
  %398 = vmatprep.subr.mxu0 0.0
  %399 = vmatpush2.msra.mxu0 0.0
  %400 = vmatprep.subr.mxu0 0.0
  %401 = vmatpush2.msra.mxu0 0.0
  %402 = vmatprep.subr.mxu0 0.0
  %403 = vmatpush2.msra.mxu0 0.0
  %404 = vmatprep.subr.mxu0 0.0
  %405 = vmatpush2.msra.mxu0 0.0
  %406 = vmatprep.subr.mxu0 0.0
  %407 = vmatpush2.msra.mxu0 0.0
  %408 = vmatprep.subr.mxu0 0.0
  %409 = vmatpush2.msra.mxu0 0.0
  %410 = vmatprep.subr.mxu0 0.0
  %411 = vmatpush2.msra.mxu0 0.0
  %412 = vmatprep.subr.mxu0 0.0
  %413 = vmatpush2.msra.mxu0 0.0
  %414 = vmatprep.subr.mxu0 0.0
  %415 = vmatpush2.msra.mxu0 0.0
  %416 = vmatprep.subr.mxu0 0.0
  %417 = vmatpush2.msra.mxu0 0.0
  %418 = vmatprep.subr.mxu0 0.0
  %419 = vmatpush2.msra.mxu0 0.0
  %420 = vmatprep.subr.mxu0 0.0
  %421 = vmatpush2.msra.mxu0 0.0
  %422 = vmatprep.subr.mxu0 0.0
  %423 = vmatpush2.msra.mxu0 0.0
  %424 = vmatprep.mubr.f32.mxu0 0.0
  %425 = vmatmul.mubr.f32.gmra.mxu0 %v358
  %v426 = vpop.f32.mrf.mxu0
  %v427 = vadd.f32 %v355, %v426
  %v428 = vpop.f32.mrf.mxu0
  %429 = vdwg.mxu0
  %430 = vst [vmem:[%s7] sm:$0xf] %v427
  // Predicated region
  $region30: #{mlp_predictor_forward.1} parent=0 // pred_check
    _
  $region31: #{mlp_predictor_forward.1} parent=0 // pred_check_branch
    %432 = sbr.rel (0) target = $region33
  $region32: #{mlp_predictor_forward.1} parent=0 // pred_region
    _
  $region33: #{mlp_predictor_forward.1} parent=0 // pred_fallthru
    _
  // Predicated region
  $region34: #{mlp_predictor_forward.1} parent=0 // pred_check
    _
  $region35: #{mlp_predictor_forward.1} parent=0 // pred_check_branch
    %434 = sbr.rel (0) target = $region37
  $region36: #{mlp_predictor_forward.1} parent=0 // pred_region
    _
  $region37: #{mlp_predictor_forward.1} parent=0 // pred_fallthru
    _

</llo_original>
